<compile_context>
chip_gen: v7x
topology: tpu7x:2x2x1
jax: 0.10.0
libtpu: 0.0.40
codegen_flags: <defaults>
</compile_context>

<pallas_src>
import functools

import jax
import jax.numpy as jnp
from jax.experimental import pallas as pl
from jax.experimental.pallas import tpu as pltpu


def _log_softmax(x):
    m = jnp.max(x, axis=1, keepdims=True)
    s = x - m
    return s - jnp.log(jnp.sum(jnp.exp(s), axis=1, keepdims=True))


def _softmax(x):
    m = jnp.max(x, axis=1, keepdims=True)
    e = jnp.exp(x - m)
    return e / jnp.sum(e, axis=1, keepdims=True)


# --------------------------------------------------------------------------------------
# Kernel 1: logits losses (last-layer CE, highway CE, KL distillation)
# --------------------------------------------------------------------------------------
def logits_loss_kernel(gamma, T,
                       outputs_ref, tgt_ref, soft_ref, hw_ref,
                       scalars_ref, mloss_ref,
                       q_scr, qlogq_scr, kld_scr, ce_scr, lce_scr):
    i = pl.program_id(0)
    n = pl.num_programs(0)
    B, L = q_scr.shape

    tgt = tgt_ref[...]                                            # (B, 1) int32
    cls = jax.lax.broadcasted_iota(jnp.int32, (B, L), 1)
    mask = cls == tgt                                             # (B, L) one-hot mask

    @pl.when(i == 0)
    def _init():
        # last_loss = F.cross_entropy(outputs, targets, reduction='none').mean()
        logp = _log_softmax(outputs_ref[...].astype(jnp.float32))
        ce = -jnp.sum(jnp.where(mask, logp, 0.0), axis=1, keepdims=True)      # (B, 1)
        lce_scr[...] = jnp.mean(ce, keepdims=True)                            # (1, 1)

        # hoist per-layer-invariant soft-target work
        q = _softmax(soft_ref[...].astype(jnp.float32) / T)
        q_scr[...] = q
        qlogq_scr[...] = jnp.where(q > 0.0, q * jnp.log(q), 0.0)

        kld_scr[...] = jnp.zeros_like(kld_scr)
        ce_scr[...] = jnp.zeros_like(ce_scr)
        scalars_ref[...] = jnp.zeros_like(scalars_ref)
        mloss_ref[...] = jnp.zeros_like(mloss_ref)

    hw = hw_ref[...].astype(jnp.float32)                          # (B, L)

    # raw per-sample highway CE (scaled by (1-gamma) only at the end)
    logp_hw = _log_softmax(hw)
    ce_scr[...] += -jnp.sum(jnp.where(mask, logp_hw, 0.0), axis=1, keepdims=True)

    # raw pointwise KL accumulation; mean / gamma*T^2 applied at the end
    logp_T = _log_softmax(hw / T)
    kld_scr[...] += qlogq_scr[...] - q_scr[...] * logp_T

    @pl.when(i == n - 1)
    def _finalize():
        # nn.KLDivLoss() default reduction='mean' => divide by B*L, summed over layers
        d_loss = jnp.sum(kld_scr[...]) * (gamma * T * T) / float(B * L)
        lanes = jax.lax.broadcasted_iota(jnp.int32, (1, 128), 1)
        scalars_ref[...] = (jnp.where(lanes == 0, lce_scr[...], 0.0)
                            + jnp.where(lanes == 1, d_loss, 0.0))
        mloss_ref[...] = (1.0 - gamma) * ce_scr[...]


# --------------------------------------------------------------------------------------
# Kernel 2: hidden-feature MSE partial sums (tiled, layer axis accumulated in-block)
# --------------------------------------------------------------------------------------
def mse_partial_kernel(lhf_ref, elhf_ref, part_ref):
    layer = pl.program_id(1)

    @pl.when(layer == 0)
    def _init():
        part_ref[...] = jnp.zeros_like(part_ref)

    d = lhf_ref[...].astype(jnp.float32) - elhf_ref[...].astype(jnp.float32)  # (TILE_R, H)
    s = jnp.sum(d * d, axis=0, keepdims=True)                                 # (1, H)
    part_ref[...] += s.reshape(part_ref.shape)                                # (1, 1, H)


def _pick_row_tile(bs, h, itemsize, max_bytes=4 * 1024 * 1024, max_rows=1024):
    """Largest multiple-of-8 row tile that divides bs and stays under max_bytes."""
    cap = max(8, min(max_rows, max_bytes // max(1, h * itemsize)))
    cap = min(cap, bs)
    t = (cap // 8) * 8
    while t >= 8:
        if bs % t == 0:
            return t
        t -= 8
    return bs  # fallback: full extent (always a legal block)


# --------------------------------------------------------------------------------------
# Wrapper
# --------------------------------------------------------------------------------------
def fkd_loss(outputs, last_hidden_feature, highway_outputs, eachlayer_hidden,
             targets, soft_targets, *, gamma, T, num_labels):
    assert num_labels > 1, "only the classification (num_labels > 1) branch is implemented"
    nB1, B, L = highway_outputs.shape
    _, S, H = last_hidden_feature.shape
    BS = B * S

    targets2d = targets.astype(jnp.int32).reshape(B, 1)

    # ---- kernel 1: logits losses ----------------------------------------------------
    k1 = functools.partial(logits_loss_kernel, float(gamma), float(T))
    scalars, m_loss_col = pl.pallas_call(
        k1,
        out_shape=(jax.ShapeDtypeStruct((1, 128), jnp.float32),   # lane0=l_loss, lane1=d_loss
                   jax.ShapeDtypeStruct((B, 1), jnp.float32)),    # per-sample m_loss
        grid_spec=pltpu.PrefetchScalarGridSpec(
            num_scalar_prefetch=0,
            grid=(nB1,),
            in_specs=[
                pl.BlockSpec((B, L), lambda i: (0, 0)),                       # outputs
                pl.BlockSpec((B, 1), lambda i: (0, 0)),                       # targets (int32)
                pl.BlockSpec((B, L), lambda i: (0, 0)),                       # soft_targets
                pl.BlockSpec((pl.Squeezed(), B, L), lambda i: (i, 0, 0)),     # highway[i]
            ],
            out_specs=[
                pl.BlockSpec((1, 128), lambda i: (0, 0)),
                pl.BlockSpec((B, 1), lambda i: (0, 0)),
            ],
            scratch_shapes=[
                pltpu.VMEM((B, L), jnp.float32),   # q = softmax(soft/T)
                pltpu.VMEM((B, L), jnp.float32),   # q * log(q)
                pltpu.VMEM((B, L), jnp.float32),   # pointwise KL accumulator
                pltpu.VMEM((B, 1), jnp.float32),   # per-sample CE accumulator
                pltpu.VMEM((1, 1), jnp.float32),   # last-layer CE
            ]),
        compiler_params=pltpu.CompilerParams(dimension_semantics=("arbitrary",)),
    )(outputs, targets2d, soft_targets, highway_outputs)

    # ---- kernel 2: hidden-feature MSE partial sums ------------------------------------
    # Native dtype (e.g. bf16) is passed straight through; f32 cast happens in-kernel.
    lhf2 = last_hidden_feature.reshape(BS, H)
    elhf3 = eachlayer_hidden.reshape(nB1, BS, H)
    tile_r = _pick_row_tile(BS, H, jnp.dtype(eachlayer_hidden.dtype).itemsize)
    rt = BS // tile_r

    partials = pl.pallas_call(
        mse_partial_kernel,
        out_shape=jax.ShapeDtypeStruct((rt, 1, H), jnp.float32),
        grid_spec=pltpu.PrefetchScalarGridSpec(
            num_scalar_prefetch=0,
            grid=(rt, nB1),
            in_specs=[
                pl.BlockSpec((tile_r, H), lambda j, i: (j, 0)),                       # lhf tile
                pl.BlockSpec((pl.Squeezed(), tile_r, H), lambda j, i: (i, j, 0)),     # elhf[i] tile
            ],
            out_specs=pl.BlockSpec((1, 1, H), lambda j, i: (j, 0, 0)),
        ),
        compiler_params=pltpu.CompilerParams(
            dimension_semantics=("parallel", "arbitrary")),
    )(lhf2, elhf3)

    l_loss = scalars[0, 0]
    d_loss = scalars[0, 1]
    m_loss = m_loss_col[:, 0]                                     # per-sample vector (B,)
    hf_loss = jnp.sum(partials) * (1e-6 / float(BS * H))

    loss = l_loss + d_loss + m_loss + hf_loss
    return loss, l_loss, d_loss, m_loss


# --------------------------------------------------------------------------------------
# Pure-JAX reference
# --------------------------------------------------------------------------------------
def _ref_fkd(outputs, lhf, hw, elhf, targets, soft, gamma, T):
    outputs = outputs.astype(jnp.float32)
    lhf = lhf.astype(jnp.float32)
    hw = hw.astype(jnp.float32)
    elhf = elhf.astype(jnp.float32)
    soft = soft.astype(jnp.float32)

    def ce_per_sample(logits):
        logp = jax.nn.log_softmax(logits, axis=1)
        return -jnp.take_along_axis(logp, targets[:, None], axis=1)[:, 0]

    l_loss = ce_per_sample(outputs).mean()
    m = jnp.zeros(outputs.shape[0], jnp.float32)
    d = jnp.float32(0.0)
    hf = jnp.float32(0.0)
    for i in range(hw.shape[0]):
        m = m + (1.0 - gamma) * ce_per_sample(hw[i])
        log_p = jax.nn.log_softmax(hw[i] / T, axis=1)
        q = jax.nn.softmax(soft / T, axis=1)
        d = d + jnp.mean(q * (jnp.log(q) - log_p)) * gamma * T * T
        hf = hf + jnp.mean((lhf - elhf[i]) ** 2) * 1e-6
    loss = l_loss + d + m + hf
    return loss, l_loss, d, m


if __name__ == "__main__":
    key = jax.random.PRNGKey(0)
    B, L, S, H = 4, 3, 8, 32
    nBlocks = 4
    gamma, T = 0.5, 2.0

    ks = jax.random.split(key, 6)
    outputs = jax.random.normal(ks[0], (B, L), jnp.float32)
    # hidden tensors in native bf16 (no wrapper upcast)
    lhf = jax.random.normal(ks[1], (B, S, H), jnp.float32).astype(jnp.bfloat16)
    hw = jax.random.normal(ks[2], (nBlocks - 1, B, L), jnp.float32)
    elhf = jax.random.normal(ks[3], (nBlocks - 1, B, S, H), jnp.float32).astype(jnp.bfloat16)
    targets = jax.random.randint(ks[4], (B,), 0, L, jnp.int32)
    soft = jax.random.normal(ks[5], (B, L), jnp.float32)

    out = fkd_loss(outputs, lhf, hw, elhf, targets, soft,
                   gamma=gamma, T=T, num_labels=L)
    out = jax.block_until_ready(out)

    ref = _ref_fkd(outputs, lhf, hw, elhf, targets, soft, gamma, T)
    for got, exp in zip(out, ref):
        assert jnp.allclose(got, exp, rtol=1e-4, atol=1e-5), (got, exp)

    print("KERNEL_OK")
</pallas_src>

<mosaic_0001>
module attributes {stable_mosaic.version = 11 : i64} {
  func.func @logits_loss_kernel(%arg0: i32, %arg1: memref<4x3xf32, #tpu.memory_space<vmem>>, %arg2: memref<4x1xi32, #tpu.memory_space<vmem>>, %arg3: memref<4x3xf32, #tpu.memory_space<vmem>>, %arg4: memref<1x4x3xf32, #tpu.memory_space<vmem>>, %arg5: memref<1x128xf32, #tpu.memory_space<vmem>>, %arg6: memref<4x1xf32, #tpu.memory_space<vmem>>, %arg7: memref<4x3xf32, #tpu.memory_space<vmem>>, %arg8: memref<4x3xf32, #tpu.memory_space<vmem>>, %arg9: memref<4x3xf32, #tpu.memory_space<vmem>>, %arg10: memref<4x1xf32, #tpu.memory_space<vmem>>, %arg11: memref<1x1xf32, #tpu.memory_space<vmem>>) attributes {dimension_semantics = [#tpu.dimension_semantics<arbitrary>], iteration_bounds = array<i64: 3>, scalar_prefetch = 0 : i64, scratch_operands = 5 : i64, tpu.core_type = #tpu.core_type<tc>, window_params = [{pipeline_mode = #tpu.pipeline_mode<synchronous>, transform_indices = @transform_0, window_bounds = array<i64: 4, 3>}, {pipeline_mode = #tpu.pipeline_mode<synchronous>, transform_indices = @transform_1, window_bounds = array<i64: 4, 1>}, {pipeline_mode = #tpu.pipeline_mode<synchronous>, transform_indices = @transform_2, window_bounds = array<i64: 4, 3>}, {transform_indices = @transform_3, window_bounds = array<i64: 1, 4, 3>}, {pipeline_mode = #tpu.pipeline_mode<synchronous>, transform_indices = @transform_4, window_bounds = array<i64: 1, 128>}, {pipeline_mode = #tpu.pipeline_mode<synchronous>, transform_indices = @transform_5, window_bounds = array<i64: 4, 1>}]} {
    %c0 = arith.constant 0 : index
    %c0_0 = arith.constant 0 : index
    %0 = vector.load %arg2[%c0, %c0_0] : memref<4x1xi32, #tpu.memory_space<vmem>>, vector<4x1xi32>
    %1 = tpu.iota {dimensions = array<i32: 1>} : vector<4x3xi32>
    %2 = vector.broadcast %0 : vector<4x1xi32> to vector<4x3xi32>
    %3 = arith.cmpi eq, %1, %2 : vector<4x3xi32>
    %c0_i32 = arith.constant 0 : i32
    %4 = arith.cmpi eq, %arg0, %c0_i32 : i32
    %5 = arith.extui %4 : i1 to i32
    %c0_i32_1 = arith.constant 0 : i32
    %6 = arith.cmpi ne, %5, %c0_i32_1 : i32
    scf.if %6 {
      %c0_25 = arith.constant 0 : index
      %c0_26 = arith.constant 0 : index
      %50 = vector.load %arg1[%c0_25, %c0_26] : memref<4x3xf32, #tpu.memory_space<vmem>>, vector<4x3xf32>
      %cst_27 = arith.constant dense<0xFF800000> : vector<4xf32>
      %51 = vector.multi_reduction <maximumf>, %50, %cst_27 [1] : vector<4x3xf32> to vector<4xf32>
      %52 = vector.shape_cast %51 : vector<4xf32> to vector<4x1xf32>
      %53 = vector.broadcast %52 : vector<4x1xf32> to vector<4x3xf32>
      %54 = arith.subf %50, %53 : vector<4x3xf32>
      %55 = math.exp %54 : vector<4x3xf32>
      %cst_28 = arith.constant dense<0.000000e+00> : vector<4xf32>
      %56 = vector.multi_reduction <add>, %55, %cst_28 [1] : vector<4x3xf32> to vector<4xf32>
      %57 = vector.shape_cast %56 : vector<4xf32> to vector<4x1xf32>
      %58 = math.log %57 : vector<4x1xf32>
      %59 = vector.broadcast %58 : vector<4x1xf32> to vector<4x3xf32>
      %60 = arith.subf %54, %59 : vector<4x3xf32>
      %cst_29 = arith.constant 0.000000e+00 : f32
      %61 = vector.broadcast %cst_29 : f32 to vector<4x3xf32>
      %62 = arith.select %3, %60, %61 : vector<4x3xi1>, vector<4x3xf32>
      %cst_30 = arith.constant dense<0.000000e+00> : vector<4xf32>
      %63 = vector.multi_reduction <add>, %62, %cst_30 [1] : vector<4x3xf32> to vector<4xf32>
      %64 = vector.shape_cast %63 : vector<4xf32> to vector<4x1xf32>
      %cst_31 = arith.constant 0.000000e+00 : f32
      %65 = vector.broadcast %cst_31 : f32 to vector<4x1xf32>
      %66 = arith.subf %65, %64 : vector<4x1xf32>
      %67 = vector.shape_cast %66 : vector<4x1xf32> to vector<1x4x1xf32>
      %cst_32 = arith.constant dense<0.000000e+00> : vector<1xf32>
      %68 = vector.multi_reduction <add>, %67, %cst_32 [1, 2] : vector<1x4x1xf32> to vector<1xf32>
      %69 = vector.shape_cast %68 : vector<1xf32> to vector<1x1x1xf32>
      %70 = vector.extract %69[0, 0, 0] : f32 from vector<1x1x1xf32>
      %71 = vector.broadcast %70 : f32 to vector<1x1xf32>
      %cst_33 = arith.constant 4.000000e+00 : f32
      %72 = vector.broadcast %cst_33 : f32 to vector<1x1xf32>
      %73 = arith.divf %71, %72 : vector<1x1xf32>
      %c0_34 = arith.constant 0 : index
      %c0_35 = arith.constant 0 : index
      %74 = vector.load %arg11[%c0_34, %c0_35] : memref<1x1xf32, #tpu.memory_space<vmem>>, vector<1x1xf32>
      tpu.vector_store %arg11[%c0_34, %c0_35], %73 {strides = array<i32>} : memref<1x1xf32, #tpu.memory_space<vmem>>, vector<1x1xf32>,
      %c0_36 = arith.constant 0 : index
      %c0_37 = arith.constant 0 : index
      %75 = vector.load %arg3[%c0_36, %c0_37] : memref<4x3xf32, #tpu.memory_space<vmem>>, vector<4x3xf32>
      %cst_38 = arith.constant 2.000000e+00 : f32
      %76 = vector.broadcast %cst_38 : f32 to vector<4x3xf32>
      %77 = arith.divf %75, %76 : vector<4x3xf32>
      %cst_39 = arith.constant dense<0xFF800000> : vector<4xf32>
      %78 = vector.multi_reduction <maximumf>, %77, %cst_39 [1] : vector<4x3xf32> to vector<4xf32>
      %79 = vector.shape_cast %78 : vector<4xf32> to vector<4x1xf32>
      %80 = vector.broadcast %79 : vector<4x1xf32> to vector<4x3xf32>
      %81 = arith.subf %77, %80 : vector<4x3xf32>
      %82 = math.exp %81 : vector<4x3xf32>
      %cst_40 = arith.constant dense<0.000000e+00> : vector<4xf32>
      %83 = vector.multi_reduction <add>, %82, %cst_40 [1] : vector<4x3xf32> to vector<4xf32>
      %84 = vector.shape_cast %83 : vector<4xf32> to vector<4x1xf32>
      %85 = vector.broadcast %84 : vector<4x1xf32> to vector<4x3xf32>
      %86 = arith.divf %82, %85 : vector<4x3xf32>
      %c0_41 = arith.constant 0 : index
      %c0_42 = arith.constant 0 : index
      %87 = vector.load %arg7[%c0_41, %c0_42] : memref<4x3xf32, #tpu.memory_space<vmem>>, vector<4x3xf32>
      tpu.vector_store %arg7[%c0_41, %c0_42], %86 {strides = array<i32>} : memref<4x3xf32, #tpu.memory_space<vmem>>, vector<4x3xf32>,
      %cst_43 = arith.constant 0.000000e+00 : f32
      %88 = vector.broadcast %cst_43 : f32 to vector<4x3xf32>
      %89 = arith.cmpf ogt, %86, %88 : vector<4x3xf32>
      %90 = math.log %86 : vector<4x3xf32>
      %91 = arith.mulf %86, %90 : vector<4x3xf32>
      %cst_44 = arith.constant 0.000000e+00 : f32
      %92 = vector.broadcast %cst_44 : f32 to vector<4x3xf32>
      %93 = arith.select %89, %91, %92 : vector<4x3xi1>, vector<4x3xf32>
      %c0_45 = arith.constant 0 : index
      %c0_46 = arith.constant 0 : index
      %94 = vector.load %arg8[%c0_45, %c0_46] : memref<4x3xf32, #tpu.memory_space<vmem>>, vector<4x3xf32>
      tpu.vector_store %arg8[%c0_45, %c0_46], %93 {strides = array<i32>} : memref<4x3xf32, #tpu.memory_space<vmem>>, vector<4x3xf32>,
      %cst_47 = arith.constant 0.000000e+00 : f32
      %95 = vector.broadcast %cst_47 : f32 to vector<4x3xf32>
      %c0_48 = arith.constant 0 : index
      %c0_49 = arith.constant 0 : index
      %96 = vector.load %arg9[%c0_48, %c0_49] : memref<4x3xf32, #tpu.memory_space<vmem>>, vector<4x3xf32>
      tpu.vector_store %arg9[%c0_48, %c0_49], %95 {strides = array<i32>} : memref<4x3xf32, #tpu.memory_space<vmem>>, vector<4x3xf32>,
      %cst_50 = arith.constant 0.000000e+00 : f32
      %97 = vector.broadcast %cst_50 : f32 to vector<4x1xf32>
      %c0_51 = arith.constant 0 : index
      %c0_52 = arith.constant 0 : index
      %98 = vector.load %arg10[%c0_51, %c0_52] : memref<4x1xf32, #tpu.memory_space<vmem>>, vector<4x1xf32>
      tpu.vector_store %arg10[%c0_51, %c0_52], %97 {strides = array<i32>} : memref<4x1xf32, #tpu.memory_space<vmem>>, vector<4x1xf32>,
      %cst_53 = arith.constant 0.000000e+00 : f32
      %99 = vector.broadcast %cst_53 : f32 to vector<1x128xf32>
      %c0_54 = arith.constant 0 : index
      %c0_55 = arith.constant 0 : index
      %100 = vector.load %arg5[%c0_54, %c0_55] : memref<1x128xf32, #tpu.memory_space<vmem>>, vector<1x128xf32>
      tpu.vector_store %arg5[%c0_54, %c0_55], %99 {strides = array<i32>} : memref<1x128xf32, #tpu.memory_space<vmem>>, vector<1x128xf32>,
      %cst_56 = arith.constant 0.000000e+00 : f32
      %101 = vector.broadcast %cst_56 : f32 to vector<4x1xf32>
      %c0_57 = arith.constant 0 : index
      %c0_58 = arith.constant 0 : index
      %102 = vector.load %arg6[%c0_57, %c0_58] : memref<4x1xf32, #tpu.memory_space<vmem>>, vector<4x1xf32>
      tpu.vector_store %arg6[%c0_57, %c0_58], %101 {strides = array<i32>} : memref<4x1xf32, #tpu.memory_space<vmem>>, vector<4x1xf32>,
    } else {
    }
    %c0_2 = arith.constant 0 : index
    %c0_3 = arith.constant 0 : index
    %c0_4 = arith.constant 0 : index
    %7 = vector.load %arg4[%c0_2, %c0_3, %c0_4] : memref<1x4x3xf32, #tpu.memory_space<vmem>>, vector<1x4x3xf32>
    %8 = vector.shape_cast %7 : vector<1x4x3xf32> to vector<4x3xf32>
    %cst = arith.constant dense<0xFF800000> : vector<4xf32>
    %9 = vector.multi_reduction <maximumf>, %8, %cst [1] : vector<4x3xf32> to vector<4xf32>
    %10 = vector.shape_cast %9 : vector<4xf32> to vector<4x1xf32>
    %11 = vector.broadcast %10 : vector<4x1xf32> to vector<4x3xf32>
    %12 = arith.subf %8, %11 : vector<4x3xf32>
    %13 = math.exp %12 : vector<4x3xf32>
    %cst_5 = arith.constant dense<0.000000e+00> : vector<4xf32>
    %14 = vector.multi_reduction <add>, %13, %cst_5 [1] : vector<4x3xf32> to vector<4xf32>
    %15 = vector.shape_cast %14 : vector<4xf32> to vector<4x1xf32>
    %16 = math.log %15 : vector<4x1xf32>
    %17 = vector.broadcast %16 : vector<4x1xf32> to vector<4x3xf32>
    %18 = arith.subf %12, %17 : vector<4x3xf32>
    %c0_6 = arith.constant 0 : index
    %c0_7 = arith.constant 0 : index
    %19 = vector.load %arg10[%c0_6, %c0_7] : memref<4x1xf32, #tpu.memory_space<vmem>>, vector<4x1xf32>
    %cst_8 = arith.constant 0.000000e+00 : f32
    %20 = vector.broadcast %cst_8 : f32 to vector<4x3xf32>
    %21 = arith.select %3, %18, %20 : vector<4x3xi1>, vector<4x3xf32>
    %cst_9 = arith.constant dense<0.000000e+00> : vector<4xf32>
    %22 = vector.multi_reduction <add>, %21, %cst_9 [1] : vector<4x3xf32> to vector<4xf32>
    %23 = vector.shape_cast %22 : vector<4xf32> to vector<4x1xf32>
    %cst_10 = arith.constant 0.000000e+00 : f32
    %24 = vector.broadcast %cst_10 : f32 to vector<4x1xf32>
    %25 = arith.subf %24, %23 : vector<4x1xf32>
    %26 = arith.addf %19, %25 : vector<4x1xf32>
    %c0_11 = arith.constant 0 : index
    %c0_12 = arith.constant 0 : index
    %27 = vector.load %arg10[%c0_11, %c0_12] : memref<4x1xf32, #tpu.memory_space<vmem>>, vector<4x1xf32>
    tpu.vector_store %arg10[%c0_11, %c0_12], %26 {strides = array<i32>} : memref<4x1xf32, #tpu.memory_space<vmem>>, vector<4x1xf32>,
    %cst_13 = arith.constant 2.000000e+00 : f32
    %28 = vector.broadcast %cst_13 : f32 to vector<4x3xf32>
    %29 = arith.divf %8, %28 : vector<4x3xf32>
    %cst_14 = arith.constant dense<0xFF800000> : vector<4xf32>
    %30 = vector.multi_reduction <maximumf>, %29, %cst_14 [1] : vector<4x3xf32> to vector<4xf32>
    %31 = vector.shape_cast %30 : vector<4xf32> to vector<4x1xf32>
    %32 = vector.broadcast %31 : vector<4x1xf32> to vector<4x3xf32>
    %33 = arith.subf %29, %32 : vector<4x3xf32>
    %34 = math.exp %33 : vector<4x3xf32>
    %cst_15 = arith.constant dense<0.000000e+00> : vector<4xf32>
    %35 = vector.multi_reduction <add>, %34, %cst_15 [1] : vector<4x3xf32> to vector<4xf32>
    %36 = vector.shape_cast %35 : vector<4xf32> to vector<4x1xf32>
    %37 = math.log %36 : vector<4x1xf32>
    %38 = vector.broadcast %37 : vector<4x1xf32> to vector<4x3xf32>
    %39 = arith.subf %33, %38 : vector<4x3xf32>
    %c0_16 = arith.constant 0 : index
    %c0_17 = arith.constant 0 : index
    %40 = vector.load %arg9[%c0_16, %c0_17] : memref<4x3xf32, #tpu.memory_space<vmem>>, vector<4x3xf32>
    %c0_18 = arith.constant 0 : index
    %c0_19 = arith.constant 0 : index
    %41 = vector.load %arg8[%c0_18, %c0_19] : memref<4x3xf32, #tpu.memory_space<vmem>>, vector<4x3xf32>
    %c0_20 = arith.constant 0 : index
    %c0_21 = arith.constant 0 : index
    %42 = vector.load %arg7[%c0_20, %c0_21] : memref<4x3xf32, #tpu.memory_space<vmem>>, vector<4x3xf32>
    %43 = arith.mulf %42, %39 : vector<4x3xf32>
    %44 = arith.subf %41, %43 : vector<4x3xf32>
    %45 = arith.addf %40, %44 : vector<4x3xf32>
    %c0_22 = arith.constant 0 : index
    %c0_23 = arith.constant 0 : index
    %46 = vector.load %arg9[%c0_22, %c0_23] : memref<4x3xf32, #tpu.memory_space<vmem>>, vector<4x3xf32>
    tpu.vector_store %arg9[%c0_22, %c0_23], %45 {strides = array<i32>} : memref<4x3xf32, #tpu.memory_space<vmem>>, vector<4x3xf32>,
    %c2_i32 = arith.constant 2 : i32
    %47 = arith.cmpi eq, %arg0, %c2_i32 : i32
    %48 = arith.extui %47 : i1 to i32
    %c0_i32_24 = arith.constant 0 : i32
    %49 = arith.cmpi ne, %48, %c0_i32_24 : i32
    scf.if %49 {
      %c0_25 = arith.constant 0 : index
      %c0_26 = arith.constant 0 : index
      %50 = vector.load %arg9[%c0_25, %c0_26] : memref<4x3xf32, #tpu.memory_space<vmem>>, vector<4x3xf32>
      %51 = vector.shape_cast %50 : vector<4x3xf32> to vector<1x4x3xf32>
      %cst_27 = arith.constant dense<0.000000e+00> : vector<1xf32>
      %52 = vector.multi_reduction <add>, %51, %cst_27 [1, 2] : vector<1x4x3xf32> to vector<1xf32>
      %53 = vector.shape_cast %52 : vector<1xf32> to vector<1x1x1xf32>
      %54 = vector.extract %53[0, 0, 0] : f32 from vector<1x1x1xf32>
      %cst_28 = arith.constant 2.000000e+00 : f32
      %55 = arith.mulf %54, %cst_28 : f32
      %cst_29 = arith.constant 1.200000e+01 : f32
      %56 = arith.divf %55, %cst_29 : f32
      %57 = tpu.iota {dimensions = array<i32: 1>} : vector<1x128xi32>
      %c0_i32_30 = arith.constant 0 : i32
      %58 = vector.broadcast %c0_i32_30 : i32 to vector<1x128xi32>
      %59 = arith.cmpi eq, %57, %58 : vector<1x128xi32>
      %c0_31 = arith.constant 0 : index
      %c0_32 = arith.constant 0 : index
      %60 = vector.load %arg11[%c0_31, %c0_32] : memref<1x1xf32, #tpu.memory_space<vmem>>, vector<1x1xf32>
      %cst_33 = arith.constant 0.000000e+00 : f32
      %61 = vector.shape_cast %60 : vector<1x1xf32> to vector<1x1xf32>
      %62 = vector.broadcast %61 : vector<1x1xf32> to vector<1x128xf32>
      %63 = vector.broadcast %cst_33 : f32 to vector<1x128xf32>
      %64 = arith.select %59, %62, %63 : vector<1x128xi1>, vector<1x128xf32>
      %c1_i32 = arith.constant 1 : i32
      %65 = vector.broadcast %c1_i32 : i32 to vector<1x128xi32>
      %66 = arith.cmpi eq, %57, %65 : vector<1x128xi32>
      %cst_34 = arith.constant 0.000000e+00 : f32
      %67 = vector.broadcast %56 : f32 to vector<1x128xf32>
      %68 = vector.broadcast %cst_34 : f32 to vector<1x128xf32>
      %69 = arith.select %66, %67, %68 : vector<1x128xi1>, vector<1x128xf32>
      %70 = arith.addf %64, %69 : vector<1x128xf32>
      %c0_35 = arith.constant 0 : index
      %c0_36 = arith.constant 0 : index
      %71 = vector.load %arg5[%c0_35, %c0_36] : memref<1x128xf32, #tpu.memory_space<vmem>>, vector<1x128xf32>
      tpu.vector_store %arg5[%c0_35, %c0_36], %70 {strides = array<i32>} : memref<1x128xf32, #tpu.memory_space<vmem>>, vector<1x128xf32>,
      %c0_37 = arith.constant 0 : index
      %c0_38 = arith.constant 0 : index
      %72 = vector.load %arg10[%c0_37, %c0_38] : memref<4x1xf32, #tpu.memory_space<vmem>>, vector<4x1xf32>
      %cst_39 = arith.constant 5.000000e-01 : f32
      %73 = vector.broadcast %cst_39 : f32 to vector<4x1xf32>
      %74 = arith.mulf %73, %72 : vector<4x1xf32>
      %c0_40 = arith.constant 0 : index
      %c0_41 = arith.constant 0 : index
      %75 = vector.load %arg6[%c0_40, %c0_41] : memref<4x1xf32, #tpu.memory_space<vmem>>, vector<4x1xf32>
      tpu.vector_store %arg6[%c0_40, %c0_41], %74 {strides = array<i32>} : memref<4x1xf32, #tpu.memory_space<vmem>>, vector<4x1xf32>,
    } else {
    }
    return
  }
  func.func @transform_0(%arg0: i32) -> (i32, i32) {
    %c0_i32 = arith.constant 0 : i32
    %c0_i32_0 = arith.constant 0 : i32
    %c0_i32_1 = arith.constant 0 : i32
    return %c0_i32, %c0_i32_0 : i32, i32
  }
  func.func @transform_1(%arg0: i32) -> (i32, i32) {
    %c0_i32 = arith.constant 0 : i32
    %c0_i32_0 = arith.constant 0 : i32
    %c0_i32_1 = arith.constant 0 : i32
    return %c0_i32, %c0_i32_0 : i32, i32
  }
  func.func @transform_2(%arg0: i32) -> (i32, i32) {
    %c0_i32 = arith.constant 0 : i32
    %c0_i32_0 = arith.constant 0 : i32
    %c0_i32_1 = arith.constant 0 : i32
    return %c0_i32, %c0_i32_0 : i32, i32
  }
  func.func @transform_3(%arg0: i32) -> (i32, i32, i32) {
    %c0_i32 = arith.constant 0 : i32
    %c0_i32_0 = arith.constant 0 : i32
    %c0_i32_1 = arith.constant 0 : i32
    return %arg0, %c0_i32, %c0_i32_0 : i32, i32, i32
  }
  func.func @transform_4(%arg0: i32) -> (i32, i32) {
    %c0_i32 = arith.constant 0 : i32
    %c0_i32_0 = arith.constant 0 : i32
    %c0_i32_1 = arith.constant 0 : i32
    return %c0_i32, %c0_i32_0 : i32, i32
  }
  func.func @transform_5(%arg0: i32) -> (i32, i32) {
    %c0_i32 = arith.constant 0 : i32
    %c0_i32_0 = arith.constant 0 : i32
    %c0_i32_1 = arith.constant 0 : i32
    return %c0_i32, %c0_i32_0 : i32, i32
  }
}

</mosaic_0001>

<llo_original>
// kernel: tpu_custom_call.1
$region0: #{tpu_custom_call.1}
  #allocation0 [shape = 'u32[]', space=smem, size = 0x4, offset = 0x4, fixed_abs, tag = 'smem constant byte address 0x4 - core index']
  #allocation1 [shape = 'u32[144,128]{1,0:T(1,128)}', space=vmem, size = 0x12000, scoped, tag = 'internal scratch']
  #allocation2 [shape = 'f32[4,3]{1,0:T(4,128)}', space=vmem, size = 0x800, scoped, tag = 'scratch operand']
  #allocation3 [shape = 'f32[4,3]{1,0:T(4,128)}', space=vmem, size = 0x800, scoped, tag = 'scratch operand']
  #allocation4 [shape = 'f32[4,3]{1,0:T(4,128)}', space=vmem, size = 0x800, scoped, tag = 'scratch operand']
  #allocation5 [shape = 'f32[4,1]{1,0:T(4,128)}', space=vmem, size = 0x800, scoped, tag = 'scratch operand']
  #allocation6 [shape = 'f32[1,1]{1,0:T(1,128)}', space=vmem, size = 0x200, scoped, tag = 'scratch operand']
  %s0 = inlined_call_operand.vmem [shape: f32[4,3], index: 0, kind: input, shape index: {}]
  %s1 = inlined_call_operand.vmem [shape: s32[4,1], index: 1, kind: input, shape index: {}]
  %s2 = inlined_call_operand.hbm [shape: f32[4,3], index: 2, kind: input, shape index: {}]
  %s3 = inlined_call_operand.vmem [shape: f32[3,4,3], index: 3, kind: input, shape index: {}]
  %s4 = inlined_call_operand.hbm [shape: f32[1,128], index: 4, kind: output, shape index: {0}]
  %s5 = inlined_call_operand.vmem [shape: f32[4,1], index: 5, kind: output, shape index: {1}]
  %6 = xla_tuple %s4, %s5
  %s7 = sld [smem:[#allocation0]]
  $region69: #{tpu_custom_call.1} parent=0
    _
  %s9 = ssub.s32 1, %s7
  %s10 = scalar_select 0, %s9, %s7
  $region1: #{tpu_custom_call.1} parent=0
    #allocation7 [shape = 'u8[2048]{0}', space=vmem, size = 0x800, scoped, tag = 'input window, operand 2, single buffered']
    #allocation8 [shape = 's32[2]{0}', space=sflag, size = 0x8, scoped, tag = 'scoped memory for tpu_custom_call.1']
    #allocation9 [shape = 's32[2]{0}', space=sflag, size = 0x8, scoped, tag = 'scoped memory for tpu_custom_call.1']
    #allocation10 [shape = 'u8[512]{0}', space=vmem, size = 0x400, scoped, tag = 'output window, operand 0, single buffered']
    %11 = vsyncpa [#allocation8], 0
    %12 = vsyncpa [#allocation9], 0
    loop: start=0, step=1, limit=5
    $region2: #{tpu_custom_call.1} parent=1 // loop_pre_header
      _
    $region3: #{tpu_custom_call.1} parent=1 // loop_header
      %s14 = sphi 0, %s18
      %p15 = scmp.ge.s32.totalorder %s14, 5
      %s22 = sphi 0, %s22
      %s24 = sphi 0, %s22
      %s25 = sphi 0, %s24
      %s39 = sphi 0, %s25
      %s43 = sphi 0, %s43
      %s45 = sphi 0, %s43
      %s46 = sphi 0, %s45
      %s60 = sphi 0, %s46
      %s64 = sphi 0, %s64
      %s66 = sphi 0, %s64
      %s67 = sphi 0, %s66
      %s81 = sphi 0, %s67
      %s87 = sphi 0, %s89
      %s90 = sphi 0, %s87
      %s91 = sphi 0, %s90
      %s107 = sphi 0, %s91
      %s111 = sphi 0, %s111
      %s113 = sphi 0, %s111
      %s114 = sphi 0, %s113
      %s128 = sphi 0, %s114
      %s132 = sphi 0, %s132
      %s134 = sphi 0, %s132
      %s135 = sphi 0, %s134
      %s149 = sphi 0, %s135
    $region4: #{tpu_custom_call.1} parent=1 // loop_header_branch
      %17 = sbr.rel (%p15) target = $region8
    $region5: #{tpu_custom_call.1} parent=1 // loop_body
      %s19 = ssub.s32 %s14, 1
      %s20 = ssub.s32 %s14, 2
      %s21 = sadd.s32 %s14, 1
      %s23 = sadd.s32 %s22, 1
      %p26 = scmp.eq.s32.totalorder %s14, 2
      %p27 = scmp.ne.s32.totalorder %s22, %s24
      %p28 = scmp.eq.s32.totalorder %s14, 0
      %p29 = por %p27, %p28
      %p30 = scmp.ne.s32.totalorder %s22, %s24
      %p31 = scmp.eq.s32.totalorder %s19, 2
      %p32 = por %p30, %p31
      %p33 = scmp.ne.s32.totalorder %s24, %s25
      %p34 = scmp.eq.s32.totalorder %s19, 0
      %p35 = por %p33, %p34
      %p36 = scmp.ne.s32.totalorder %s24, %s25
      %p37 = scmp.eq.s32.totalorder %s20, 2
      %p38 = por %p36, %p37
      %p40 = scmp.ne.s32.totalorder %s25, %s39
      %p41 = scmp.eq.s32.totalorder %s20, 0
      %p42 = por %p40, %p41
      %s44 = sadd.s32 %s43, 1
      %p47 = scmp.eq.s32.totalorder %s14, 2
      %p48 = scmp.ne.s32.totalorder %s43, %s45
      %p49 = scmp.eq.s32.totalorder %s14, 0
      %p50 = por %p48, %p49
      %p51 = scmp.ne.s32.totalorder %s43, %s45
      %p52 = scmp.eq.s32.totalorder %s19, 2
      %p53 = por %p51, %p52
      %p54 = scmp.ne.s32.totalorder %s45, %s46
      %p55 = scmp.eq.s32.totalorder %s19, 0
      %p56 = por %p54, %p55
      %p57 = scmp.ne.s32.totalorder %s45, %s46
      %p58 = scmp.eq.s32.totalorder %s20, 2
      %p59 = por %p57, %p58
      %p61 = scmp.ne.s32.totalorder %s46, %s60
      %p62 = scmp.eq.s32.totalorder %s20, 0
      %p63 = por %p61, %p62
      %s65 = sadd.s32 %s64, 1
      %p68 = scmp.eq.s32.totalorder %s14, 2
      %p69 = scmp.ne.s32.totalorder %s64, %s66
      %p70 = scmp.eq.s32.totalorder %s14, 0
      %p71 = por %p69, %p70
      %p72 = scmp.ne.s32.totalorder %s64, %s66
      %p73 = scmp.eq.s32.totalorder %s19, 2
      %p74 = por %p72, %p73
      %p75 = scmp.ne.s32.totalorder %s66, %s67
      %p76 = scmp.eq.s32.totalorder %s19, 0
      %p77 = por %p75, %p76
      %p78 = scmp.ne.s32.totalorder %s66, %s67
      %p79 = scmp.eq.s32.totalorder %s20, 2
      %p80 = por %p78, %p79
      %p82 = scmp.ne.s32.totalorder %s67, %s81
      %p83 = scmp.eq.s32.totalorder %s20, 0
      %p84 = por %p82, %p83
      %s85 = ssub.s32 %s14, %s21
      %p86 = scmp.eq.s32.totalorder %s85, 0
      %s88 = sadd.s32 %s87, 1
      %s89 = scalar_select %p86, %s87, %s88
      %p92 = pneg %p86
      %p93 = scmp.eq.s32.totalorder %s14, 2
      %p94 = por %p92, %p93
      %p95 = scmp.ne.s32.totalorder %s87, %s90
      %p96 = scmp.eq.s32.totalorder %s14, 0
      %p97 = por %p95, %p96
      %p98 = scmp.ne.s32.totalorder %s87, %s90
      %p99 = scmp.eq.s32.totalorder %s19, 2
      %p100 = por %p98, %p99
      %p101 = scmp.ne.s32.totalorder %s90, %s91
      %p102 = scmp.eq.s32.totalorder %s19, 0
      %p103 = por %p101, %p102
      %p104 = scmp.ne.s32.totalorder %s90, %s91
      %p105 = scmp.eq.s32.totalorder %s20, 2
      %p106 = por %p104, %p105
      %p108 = scmp.ne.s32.totalorder %s91, %s107
      %p109 = scmp.eq.s32.totalorder %s20, 0
      %p110 = por %p108, %p109
      %s112 = sadd.s32 %s111, 1
      %p115 = scmp.eq.s32.totalorder %s14, 2
      %p116 = scmp.ne.s32.totalorder %s111, %s113
      %p117 = scmp.eq.s32.totalorder %s14, 0
      %p118 = por %p116, %p117
      %p119 = scmp.ne.s32.totalorder %s111, %s113
      %p120 = scmp.eq.s32.totalorder %s19, 2
      %p121 = por %p119, %p120
      %p122 = scmp.ne.s32.totalorder %s113, %s114
      %p123 = scmp.eq.s32.totalorder %s19, 0
      %p124 = por %p122, %p123
      %p125 = scmp.ne.s32.totalorder %s113, %s114
      %p126 = scmp.eq.s32.totalorder %s20, 2
      %p127 = por %p125, %p126
      %p129 = scmp.ne.s32.totalorder %s114, %s128
      %p130 = scmp.eq.s32.totalorder %s20, 0
      %p131 = por %p129, %p130
      %s133 = sadd.s32 %s132, 1
      %p136 = scmp.eq.s32.totalorder %s14, 2
      %p137 = scmp.ne.s32.totalorder %s132, %s134
      %p138 = scmp.eq.s32.totalorder %s14, 0
      %p139 = por %p137, %p138
      %p140 = scmp.ne.s32.totalorder %s132, %s134
      %p141 = scmp.eq.s32.totalorder %s19, 2
      %p142 = por %p140, %p141
      %p143 = scmp.ne.s32.totalorder %s134, %s135
      %p144 = scmp.eq.s32.totalorder %s19, 0
      %p145 = por %p143, %p144
      %p146 = scmp.ne.s32.totalorder %s134, %s135
      %p147 = scmp.eq.s32.totalorder %s20, 2
      %p148 = por %p146, %p147
      %p150 = scmp.ne.s32.totalorder %s135, %s149
      %p151 = scmp.eq.s32.totalorder %s20, 0
      %p152 = por %p150, %p151
      %p153 = scmp.le.s32.totalorder 1, %s14
      %p154 = scmp.lt.s32.totalorder %s14, 4
      %p155 = pnand %p153, %p154
      %p156 = pneg %p155
      // Predicated region
      $region9: #{tpu_custom_call.1} parent=5 // pred_check
        _
      $region10: #{tpu_custom_call.1} parent=5 // pred_check_branch
        %158 = sbr.rel (%p155) target = $region12
      $region11: #{tpu_custom_call.1} parent=5 // pred_region
        %s159 = ssub.s32 %s14, 1
        // Predicated region
        $region13: #{tpu_custom_call.1} parent=11 // pred_check
          %p160 = pneg %p35
        $region14: #{tpu_custom_call.1} parent=11 // pred_check_branch
          %162 = sbr.rel (%p160) target = $region16
        $region15: #{tpu_custom_call.1} parent=11 // pred_region
          _
        $region16: #{tpu_custom_call.1} parent=11 // pred_fallthru
          _
        // Predicated region
        $region17: #{tpu_custom_call.1} parent=11 // pred_check
          %p163 = pneg %p56
        $region18: #{tpu_custom_call.1} parent=11 // pred_check_branch
          %165 = sbr.rel (%p163) target = $region20
        $region19: #{tpu_custom_call.1} parent=11 // pred_region
          _
        $region20: #{tpu_custom_call.1} parent=11 // pred_fallthru
          _
        // Predicated region
        $region21: #{tpu_custom_call.1} parent=11 // pred_check
          %p166 = pneg %p77
        $region22: #{tpu_custom_call.1} parent=11 // pred_check_branch
          %168 = sbr.rel (%p166) target = $region24
        $region23: #{tpu_custom_call.1} parent=11 // pred_region
          %s170 = ssub.s32 64, 64
          %171 = vsyncadd [#allocation8], %s170
          %s173 = sshll.u32 [#allocation7], 4
          %s174 = int_to_ptr.vmem [resolvable:$true] %s173
          %176 = dma.hbm_to_vmem [thread:$0]  %s2, 64, %s174, [#allocation8]
        $region24: #{tpu_custom_call.1} parent=11 // pred_fallthru
          _
      $region12: #{tpu_custom_call.1} parent=5 // pred_fallthru
        _
      %p177 = scmp.lt.s32.totalorder %s14, 3
      // Predicated region
      $region25: #{tpu_custom_call.1} parent=5 // pred_check
        %p178 = pneg %p177
      $region26: #{tpu_custom_call.1} parent=5 // pred_check_branch
        %180 = sbr.rel (%p178) target = $region28
      $region27: #{tpu_custom_call.1} parent=5 // pred_region
        // Predicated region
        $region29: #{tpu_custom_call.1} parent=27 // pred_check
          %p181 = pneg %p97
        $region30: #{tpu_custom_call.1} parent=27 // pred_check_branch
          %183 = sbr.rel (%p181) target = $region32
        $region31: #{tpu_custom_call.1} parent=27 // pred_region
          %p184 = scmp.lt.s32.totalorder %s14, 2
          %s185 = scalar_select %p184, %s14, 2
          %s186 = smul.addr %s185, 4
          %s187 = scalar_lea.vmem %s3, %s186
        $region32: #{tpu_custom_call.1} parent=27 // pred_fallthru
          _
      $region28: #{tpu_custom_call.1} parent=5 // pred_fallthru
        _
      %p188 = scmp.le.s32.totalorder 1, %s14
      %p189 = scmp.lt.s32.totalorder %s14, 4
      %p190 = pnand %p188, %p189
      %p191 = pneg %p190
      // Predicated region
      $region33: #{tpu_custom_call.1} parent=5 // pred_check
        _
      $region34: #{tpu_custom_call.1} parent=5 // pred_check_branch
        %193 = sbr.rel (%p190) target = $region36
      $region35: #{tpu_custom_call.1} parent=5 // pred_region
        %s194 = ssub.s32 %s14, 1
        // Predicated region
        $region37: #{tpu_custom_call.1} parent=35 // pred_check
          %p195 = pneg %p77
        $region38: #{tpu_custom_call.1} parent=35 // pred_check_branch
          %197 = sbr.rel (%p195) target = $region40
        $region39: #{tpu_custom_call.1} parent=35 // pred_region
          %198 = dma.done [#allocation8], 64
        $region40: #{tpu_custom_call.1} parent=35 // pred_fallthru
          _
        %p199 = pneg %p35
        %p200 = pneg %p32
        %p201 = pneg %p56
        %p202 = pneg %p53
        %p203 = pneg %p77
        %p204 = pneg %p74
        %p205 = scmp.lt.s32.totalorder %s19, 2
        %s206 = scalar_select %p205, %s19, 2
        %s207 = smul.addr %s206, 4
        %s208 = scalar_lea.vmem %s3, %s207
        %p209 = pneg %p103
        %p210 = pneg %p100
        %p211 = pneg %p124
        %p212 = pneg %p121
        %p213 = pneg %p145
        %p214 = pneg %p142
        %p215 = scmp.lt.s32.totalorder %s19, 2
        %s216 = scalar_select %p215, %s19, 2
        %s217 = smul.addr %s216, 4
        %s218 = scalar_lea.vmem %s3, %s217
        %v219 = vld [vmem:[%s1] sm:$0xf]
        %v220 = vlaneseq
        %v221 = vand.u32 %v220, 127
        %222 = vset.pattern.permute.xlu0 0
        %223 = vperm.xlu0 %222, %v219
        %v224 = vpop.permute.xlu0 %223
        %vm225 = vcmp.eq.s32.totalorder %v221, %v224
        %p226 = scmp.eq.s32.totalorder %s19, 0
        // Predicated region
        $region41: #{tpu_custom_call.1} parent=35 // pred_check
          %p227 = pneg %p226
        $region42: #{tpu_custom_call.1} parent=35 // pred_check_branch
          %229 = sbr.rel (%p227) target = $region44
        $region43: #{tpu_custom_call.1} parent=35 // pred_region
          %v230 = vld [vmem:[%s0] sm:$0xf]
          %vm231 = vcmask 19456
          %v232 = vsel %vm231, %v230, -inf
          %233 = vmax.xlane.f32.xlu0 %v232
          %v234 = vpop.xlane.xlu0 %233
          %v235 = vsub.f32 %v230, %v234
          %v236 = vmul.f32 %v235, 1.442695
          %v237 = vpow.pop %v236
          %v238 = vsel %vm231, %v237, 0.0
          %239 = vadd.xlane.f32.xlu0 %v238
          %v240 = vpop.xlane.xlu0 %239
          %v241 = vlog2.pop %v240
          %v242 = vmul.f32 %v241, 0.6931472
          %v243 = vsub.f32 %v235, %v242
          %v244 = vsel %vm225, %v243, 0.0
          %v245 = vsel %vm231, %v244, 0.0
          %246 = vadd.xlane.f32.xlu0 %v245
          %v247 = vpop.xlane.xlu0 %246
          %v248 = vsub.f32 0.0, %v247
          %vm249 = vcmask 3072
          %v250 = vsel %vm249, %v248, 0.0
          %251 = vadd.xlane.f32.xlu0 %v250
          %v252 = vpop.xlane.xlu0 %251
          %v253 = vrot.slane %v252, 4
          %v254 = vadd.f32 %v252, %v253
          %v255 = vrot.slane %v254, 2
          %v256 = vadd.f32 %v254, %v255
          %v257 = vrot.slane %v256, 1
          %v258 = vadd.f32 %v256, %v257
          %s259 = vtos %v258
          %v260 = vstv %s259
          %v261 = vrcp.pop 4.0
          %v262 = vmul.f32 %v260, %v261
          %vm263 = vcmask 0
          %264 = vst.msk [vmem:[#allocation6] sm:$0x1] %vm263, %v262
          %v265 = vld [vmem:[#allocation7] sm:$0xf]
          %v266 = vrcp.pop 2.0
          %v267 = vmul.f32 %v265, %v266
          %v268 = vsel %vm231, %v267, -inf
          %269 = vmax.xlane.f32.xlu0 %v268
          %v270 = vpop.xlane.xlu0 %269
          %v271 = vsub.f32 %v267, %v270
          %v272 = vmul.f32 %v271, 1.442695
          %v273 = vpow.pop %v272
          %v274 = vsel %vm231, %v273, 0.0
          %275 = vadd.xlane.f32.xlu0 %v274
          %v276 = vpop.xlane.xlu0 %275
          %v277 = vrcp.pop %v276
          %v278 = vmul.f32 %v273, %v277
          %279 = vst.msk [vmem:[#allocation2] sm:$0xf] %vm231, %v278
          %vm280 = vcmp.gt.f32.partialorder %v278, 0.0
          %v281 = vlog2.pop %v278
          %v282 = vmul.f32 %v281, 0.6931472
          %v283 = vmul.f32 %v278, %v282
          %v284 = vsel %vm280, %v283, 0.0
          %285 = vst.msk [vmem:[#allocation3] sm:$0xf] %vm231, %v284
          %286 = vst.msk [vmem:[#allocation4] sm:$0xf] %vm231, 0.0
          %287 = vst.msk [vmem:[#allocation5] sm:$0xf] %vm249, 0.0
          %288 = vst [vmem:[#allocation10] sm:$0x1] 0.0
          %289 = vst.msk [vmem:[%s5] sm:$0xf] %vm249, 0.0
        $region44: #{tpu_custom_call.1} parent=35 // pred_fallthru
          _
        %v290 = vld [vmem:[%s218] sm:$0xf]
        %vm291 = vcmask 19456
        %v292 = vsel %vm291, %v290, -inf
        %293 = vmax.xlane.f32.xlu0 %v292
        %v294 = vpop.xlane.xlu0 %293
        %v295 = vsub.f32 %v290, %v294
        %v296 = vmul.f32 %v295, 1.442695
        %v297 = vpow.pop %v296
        %v298 = vsel %vm291, %v297, 0.0
        %299 = vadd.xlane.f32.xlu0 %v298
        %v300 = vpop.xlane.xlu0 %299
        %v301 = vlog2.pop %v300
        %v302 = vmul.f32 %v301, 0.6931472
        %v303 = vsub.f32 %v295, %v302
        %v304 = vld [vmem:[#allocation5] sm:$0xf]
        %v305 = vsel %vm225, %v303, 0.0
        %v306 = vsel %vm291, %v305, 0.0
        %307 = vadd.xlane.f32.xlu0 %v306
        %v308 = vpop.xlane.xlu0 %307
        %v309 = vsub.f32 0.0, %v308
        %v310 = vadd.f32 %v304, %v309
        %vm311 = vcmask 3072
        %312 = vst.msk [vmem:[#allocation5] sm:$0xf] %vm311, %v310
        %v313 = vrcp.pop 2.0
        %v314 = vmul.f32 %v290, %v313
        %v315 = vsel %vm291, %v314, -inf
        %316 = vmax.xlane.f32.xlu0 %v315
        %v317 = vpop.xlane.xlu0 %316
        %v318 = vsub.f32 %v314, %v317
        %v319 = vmul.f32 %v318, 1.442695
        %v320 = vpow.pop %v319
        %v321 = vsel %vm291, %v320, 0.0
        %322 = vadd.xlane.f32.xlu0 %v321
        %v323 = vpop.xlane.xlu0 %322
        %v324 = vlog2.pop %v323
        %v325 = vmul.f32 %v324, 0.6931472
        %v326 = vsub.f32 %v318, %v325
        %v327 = vld [vmem:[#allocation4] sm:$0xf]
        %v328 = vld [vmem:[#allocation3] sm:$0xf]
        %v329 = vld [vmem:[#allocation2] sm:$0xf]
        %v330 = vmul.f32 %v329, %v326
        %v331 = vsub.f32 %v328, %v330
        %v332 = vadd.f32 %v327, %v331
        %333 = vst.msk [vmem:[#allocation4] sm:$0xf] %vm291, %v332
        %p334 = scmp.eq.s32.totalorder %s19, 2
        // Predicated region
        $region45: #{tpu_custom_call.1} parent=35 // pred_check
          %p335 = pneg %p334
        $region46: #{tpu_custom_call.1} parent=35 // pred_check_branch
          %337 = sbr.rel (%p335) target = $region48
        $region47: #{tpu_custom_call.1} parent=35 // pred_region
          %v338 = vld [vmem:[#allocation4] sm:$0xf]
          %v339 = vsel %vm291, %v338, 0.0
          %340 = vadd.xlane.f32.xlu0 %v339
          %v341 = vpop.xlane.xlu0 %340
          %v342 = vrot.slane %v341, 4
          %v343 = vadd.f32 %v341, %v342
          %v344 = vrot.slane %v343, 2
          %v345 = vadd.f32 %v343, %v344
          %v346 = vrot.slane %v345, 1
          %v347 = vadd.f32 %v345, %v346
          %s348 = vtos %v347
          %s349 = smul.f32 %s348, 2.0
          %v350 = vrcp.pop 12.0
          %s351 = vtos %v350
          %s352 = smul.f32 %s349, %s351
          %vm353 = vcmp.eq.s32.totalorder %v221, 0
          %v354 = vld [vmem:[#allocation6] sm:$0x1]
          %356 = vset.pattern.permute.xlu0 0
          %357 = vperm.xlu0 %356, %v354
          %v358 = vpop.permute.xlu0 %357
          %v360 = vlaneseq
          %v361 = vshrl.u32 %v360, 7
          %v362 = vsub.s32 0, %v361
          %v363 = vrot.slane %v358, %v362
          %v364 = vsel %vm353, %v363, 0.0
          %vm365 = vcmp.eq.s32.totalorder %v221, 1
          %v366 = vstv %s352
          %v367 = vsel %vm365, %v366, 0.0
          %v368 = vadd.f32 %v364, %v367
          %369 = vst [vmem:[#allocation10] sm:$0x1] %v368
          %v370 = vld [vmem:[#allocation5] sm:$0xf]
          %v371 = vmul.f32 %v370, 0.5
          %372 = vst.msk [vmem:[%s5] sm:$0xf] %vm311, %v371
        $region48: #{tpu_custom_call.1} parent=35 // pred_fallthru
          _
        // Predicated region
        $region49: #{tpu_custom_call.1} parent=35 // pred_check
          %p373 = pneg %p121
        $region50: #{tpu_custom_call.1} parent=35 // pred_check_branch
          %375 = sbr.rel (%p373) target = $region52
        $region51: #{tpu_custom_call.1} parent=35 // pred_region
          %s377 = ssub.s32 16, 16
          %378 = vsyncadd [#allocation9], %s377
          %s380 = sshll.u32 [#allocation10], 4
          %s381 = int_to_ptr.vmem [resolvable:$true] %s380
          %383 = dma.vmem_to_hbm [thread:$0]  %s381, 16, %s4, [#allocation9]
        $region52: #{tpu_custom_call.1} parent=35 // pred_fallthru
          _
        // Predicated region
        $region53: #{tpu_custom_call.1} parent=35 // pred_check
          %p384 = pneg %p142
        $region54: #{tpu_custom_call.1} parent=35 // pred_check_branch
          %386 = sbr.rel (%p384) target = $region56
        $region55: #{tpu_custom_call.1} parent=35 // pred_region
          _
        $region56: #{tpu_custom_call.1} parent=35 // pred_fallthru
          _
        // Predicated region
        $region57: #{tpu_custom_call.1} parent=35 // pred_check
          %p387 = pneg %p121
        $region58: #{tpu_custom_call.1} parent=35 // pred_check_branch
          %389 = sbr.rel (%p387) target = $region60
        $region59: #{tpu_custom_call.1} parent=35 // pred_region
          %390 = dma.done [#allocation9], 16
        $region60: #{tpu_custom_call.1} parent=35 // pred_fallthru
          _
        // Predicated region
        $region61: #{tpu_custom_call.1} parent=35 // pred_check
          %p391 = pneg %p142
        $region62: #{tpu_custom_call.1} parent=35 // pred_check_branch
          %393 = sbr.rel (%p391) target = $region64
        $region63: #{tpu_custom_call.1} parent=35 // pred_region
          _
        $region64: #{tpu_custom_call.1} parent=35 // pred_fallthru
          _
      $region36: #{tpu_custom_call.1} parent=5 // pred_fallthru
        _
      %p394 = scmp.le.s32.totalorder 2, %s14
      // Predicated region
      $region65: #{tpu_custom_call.1} parent=5 // pred_check
        %p395 = pneg %p394
      $region66: #{tpu_custom_call.1} parent=5 // pred_check_branch
        %397 = sbr.rel (%p395) target = $region68
      $region67: #{tpu_custom_call.1} parent=5 // pred_region
        %s398 = ssub.s32 %s14, 2
      $region68: #{tpu_custom_call.1} parent=5 // pred_fallthru
        _
    $region6: #{tpu_custom_call.1} parent=1 // loop_footer
      %s18 = sadd.s32 1, %s14
    $region7: #{tpu_custom_call.1} parent=1 // loop_footer_branch
      %13 = sbr.rel target = $region3
    $region8: #{tpu_custom_call.1} parent=1 // loop_exit
      _
    %399 = vsyncpa [#allocation8], 1
    %s400 = scalar_lea.sflag [#allocation8], 1
    %401 = vsyncpa %s400, 1
    %402 = vsyncpa [#allocation9], 1
    %s403 = scalar_lea.sflag [#allocation9], 1
    %404 = vsyncpa %s403, 1

</llo_original>
